<compile_context>
chip_gen: v7x
topology: tpu7x:2x2x1
jax: 0.10.0
libtpu: 0.0.40
codegen_flags: <defaults>
</compile_context>

<pallas_src>
import functools

import jax
import jax.numpy as jnp
from jax import lax
from jax.experimental import pallas as pl
from jax.experimental.pallas import tpu as pltpu

EPS_PPO = 1e-5

# PPO hyperparameters (deterministic __init__ scalars — this module has no weights)
CLIP_PARAM = 0.2
VALUE_LOSS_COEF = 0.5
ENTROPY_COEF = 0.01

_LANES = 128
_SUBLANES = 8


def _cdiv(a, b):
    return -(-a // b)


def _round_up(a, b):
    return _cdiv(a, b) * b


_MAX_TILE_ROWS_CACHE = None


def _max_tile_rows():
    """Per-generation streamed-block height (rows of a (rows, 128) f32 block)."""
    global _MAX_TILE_ROWS_CACHE
    if _MAX_TILE_ROWS_CACHE is not None:
        return _MAX_TILE_ROWS_CACHE
    rows = 1024  # conservative fallback
    try:
        info_fn = getattr(pltpu, "get_tpu_info", None)
        if info_fn is not None:
            vmem = getattr(info_fn(), "vmem_capacity_bytes", 0) or 0
            if vmem >= 100 * 2**20:
                rows = 4096   # v5e / v6e: 128 MiB VMEM -> 2 MiB blocks
            elif vmem > 0:
                rows = 2048   # v7x: 64 MiB VMEM -> 1 MiB blocks
    except Exception:
        pass
    _MAX_TILE_ROWS_CACHE = rows
    return rows


def _layout(n_elems):
    """Lane-dense layout for n_elems flattened f32 elements.

    Rows are padded only to a sublane multiple (plus at most one tile for the
    multi-tile case), minimizing the pad/copy cost flagged in the perf review.
    """
    rows = max(1, _cdiv(n_elems, _LANES))
    rows8 = _round_up(rows, _SUBLANES)
    tile_rows = min(_max_tile_rows(), rows8)
    rows_padded = _round_up(rows8, tile_rows)
    n_tiles = rows_padded // tile_rows
    return tile_rows, rows_padded, n_tiles


def _to_lane_dense(x, rows_padded):
    """Flatten to 1D f32, zero-pad (only if needed), reshape to (rows_padded, 128)."""
    flat = jnp.asarray(x, jnp.float32).reshape(-1)
    pad = rows_padded * _LANES - flat.shape[0]
    if pad:
        # TODO(synk): allocate the rollout buffers directly in this (rows, 128)
        # layout so this pad+copy (an extra HBM pass per tensor) disappears.
        flat = jnp.pad(flat, (0, pad))
    return flat.reshape(rows_padded, _LANES)


def _tail_mask(shape, n_valid, row_offset=0):
    """True for elements belonging to the original (un-padded) array."""
    row = lax.broadcasted_iota(jnp.int32, shape, 0)
    lane = lax.broadcasted_iota(jnp.int32, shape, 1)
    return (row_offset + row) * _LANES + lane < n_valid


def _compiler_params(num_streamed, tile_rows, grid_rank):
    tile_bytes = tile_rows * _LANES * 4
    # double-buffered streamed blocks + headroom for tiny partial outputs / internal
    # scratch; stays within the v7x 64 MiB physical VMEM at the 2048-row cap and
    # within v5e/v6e 128 MiB at the 4096-row cap.
    limit = num_streamed * 2 * tile_bytes + 8 * 2**20
    if grid_rank:
        return pltpu.CompilerParams(
            dimension_semantics=("parallel",) * grid_rank,
            vmem_limit_bytes=int(limit),
        )
    return pltpu.CompilerParams(vmem_limit_bytes=int(limit))


# ----------------------------------------------------------------------------------
# get_advantages: adv = returns[:-1] - value_preds[:-1];
#                 normalized = (adv - adv.mean()) / (adv.std() + EPS_PPO)
# ----------------------------------------------------------------------------------
def _adv_norm_fused_kernel(ret_ref, vp_ref, adv_ref, *, n_valid, mask_tail):
    """Single-block fast path: stats + normalization in one invocation."""
    adv_raw = ret_ref[...] - vp_ref[...]          # padded tail is 0 - 0 = 0
    s = jnp.sum(adv_raw)
    ss = jnp.sum(adv_raw * adv_raw)
    mean = s * (1.0 / n_valid)
    denom = n_valid - 1 if n_valid > 1 else 1     # torch .std() uses N-1
    # E[x^2]-E[x]^2 form; fine for advantages (see review correctness note).
    var = jnp.maximum((ss - s * mean) * (1.0 / denom), 0.0)
    inv_std = 1.0 / (jnp.sqrt(var) + EPS_PPO)     # exact, off the streaming path
    normalized = (adv_raw - mean) * inv_std
    if mask_tail:
        # keep the padded tail at exactly 0 so the dense array feeds the loss
        # kernel directly (adv=0 => zero surrogate contribution).
        normalized = jnp.where(_tail_mask(adv_raw.shape, n_valid), normalized, 0.0)
    adv_ref[...] = normalized


def _adv_stats_kernel(ret_ref, vp_ref, part_ref):
    """Multi-tile stats pass: per-tile lane-partials for sum and sum-of-squares."""
    adv_raw = ret_ref[...] - vp_ref[...]
    s = jnp.sum(adv_raw, axis=0, keepdims=True)             # (1, 128)
    ss = jnp.sum(adv_raw * adv_raw, axis=0, keepdims=True)  # (1, 128)
    row = lax.broadcasted_iota(jnp.int32, part_ref.shape, 0)
    part_ref[...] = jnp.where(row == 0, s, jnp.where(row == 1, ss, 0.0))


def _adv_normalize_kernel(stats_ref, ret_ref, vp_ref, adv_ref, *,
                          n_valid, tile_rows, mask_tail):
    """Multi-tile normalize pass: mean / inv_std are precomputed scalars in SMEM."""
    mean = stats_ref[0]
    inv_std = stats_ref[1]
    normalized = (ret_ref[...] - vp_ref[...] - mean) * inv_std
    adv_ref[...] = normalized
    if mask_tail:
        t = pl.program_id(0)

        @pl.when(t == pl.num_programs(0) - 1)
        def _():
            mask = _tail_mask(normalized.shape, n_valid, row_offset=t * tile_rows)
            adv_ref[...] = jnp.where(mask, normalized, 0.0)


def _normalized_advantages_dense(r, v, n):
    tile_rows, rows_padded, n_tiles = _layout(n)
    rd = _to_lane_dense(r, rows_padded)
    vd = _to_lane_dense(v, rows_padded)
    mask_tail = rows_padded * _LANES != n

    if n_tiles == 1:
        # Fast path: whole rollout fits one VMEM block -> single ungridded call.
        return pl.pallas_call(
            functools.partial(_adv_norm_fused_kernel, n_valid=n, mask_tail=mask_tail),
            out_shape=jax.ShapeDtypeStruct((rows_padded, _LANES), jnp.float32),
            compiler_params=_compiler_params(3, tile_rows, 0),
        )(rd, vd)

    block = pl.BlockSpec((tile_rows, _LANES), lambda i: (i, 0))
    part_spec = pl.BlockSpec((_SUBLANES, _LANES), lambda i: (i, 0))

    # Pass 1: per-tile lane partials (tile axis is "parallel" -> both v7x cores).
    part = pl.pallas_call(
        _adv_stats_kernel,
        out_shape=jax.ShapeDtypeStruct((n_tiles * _SUBLANES, _LANES), jnp.float32),
        grid=(n_tiles,),
        in_specs=[block, block],
        out_specs=part_spec,
        compiler_params=_compiler_params(2, tile_rows, 1),
    )(rd, vd)
    part = part.reshape(n_tiles, _SUBLANES, _LANES)
    s = jnp.sum(part[:, 0, :])
    ss = jnp.sum(part[:, 1, :])
    mean = s * (1.0 / n)
    denom = n - 1 if n > 1 else 1
    var = jnp.maximum((ss - s * mean) * (1.0 / denom), 0.0)
    inv_std = 1.0 / (jnp.sqrt(var) + EPS_PPO)
    stats = jnp.stack([mean, inv_std]).astype(jnp.float32)   # (2,) scalars -> SMEM

    # Pass 2: normalize, reading the two finalized scalars once from SMEM.
    return pl.pallas_call(
        functools.partial(_adv_normalize_kernel, n_valid=n, tile_rows=tile_rows,
                          mask_tail=mask_tail),
        out_shape=jax.ShapeDtypeStruct((rows_padded, _LANES), jnp.float32),
        grid=(n_tiles,),
        in_specs=[pl.BlockSpec(memory_space=pltpu.MemorySpace.SMEM), block, block],
        out_specs=block,
        compiler_params=_compiler_params(3, tile_rows, 1),
    )(stats, rd, vd)


def get_advantages(returns, value_preds, use_normalized_advantage=True,
                   return_dense=False):
    """returns / value_preds: (T+1, B, 1) rollout buffers.

    return_dense=True keeps the normalized advantages in the padded lane-dense
    (rows_padded, 128) layout so they can be fed to ppo_losses without a re-pad.
    """
    r = jnp.asarray(returns[:-1], jnp.float32)
    v = jnp.asarray(value_preds[:-1], jnp.float32)
    if not use_normalized_advantage:
        return r - v
    n = int(r.size)
    dense = _normalized_advantages_dense(r, v, n)
    if return_dense:
        return dense
    return dense.reshape(-1)[:n].reshape(r.shape)


# ----------------------------------------------------------------------------------
# PPO loss (one minibatch): clipped surrogate + clipped value loss + entropy.
# Per-tile lane-partials on a "parallel" grid; tiny scalar finalize in JAX.
# ----------------------------------------------------------------------------------
def _ppo_loss_kernel(values_ref, alp_ref, old_alp_ref, adv_ref, vpred_ref, ret_ref,
                     ent_ref, part_ref):
    values = values_ref[...]
    adv = adv_ref[...]
    # Padded tails: alp = old_alp = 0 -> ratio = 1; adv = 0 -> surrogate terms 0;
    # values = vpred = ret = ent = 0 -> value/entropy terms 0. No masking needed.
    ratio = jnp.exp(alp_ref[...] - old_alp_ref[...])
    surr1 = ratio * adv
    surr2 = jnp.clip(ratio, 1.0 - CLIP_PARAM, 1.0 + CLIP_PARAM) * adv
    min_surr = jnp.minimum(surr1, surr2)

    vpred = vpred_ref[...]
    ret = ret_ref[...]
    # use_clipped_value_loss=True branch
    vpred_clipped = vpred + jnp.clip(values - vpred, -CLIP_PARAM, CLIP_PARAM)
    d = values - ret
    dc = vpred_clipped - ret
    max_vl = jnp.maximum(d * d, dc * dc)

    surr_p = jnp.sum(min_surr, axis=0, keepdims=True)     # (1, 128)
    vl_p = jnp.sum(max_vl, axis=0, keepdims=True)
    ent_p = jnp.sum(ent_ref[...], axis=0, keepdims=True)

    row = lax.broadcasted_iota(jnp.int32, part_ref.shape, 0)   # (8, 128)
    part_ref[...] = jnp.where(row == 0, surr_p,
                              jnp.where(row == 1, vl_p,
                                        jnp.where(row == 2, ent_p, 0.0)))


def ppo_losses(values, action_log_probs, old_action_log_probs, advantages,
               value_preds, returns, dist_entropy, *, advantages_is_dense=False):
    """Per-minibatch PPO losses (means over the minibatch, matching torch .mean()).

    Returns (value_loss, action_loss, dist_entropy, total_loss) as f32 scalars.
    advantages may be passed in the lane-dense layout (advantages_is_dense=True).
    """
    values = jnp.asarray(values, jnp.float32)
    n = int(values.size)
    tile_rows, rows_padded, n_tiles = _layout(n)

    if advantages_is_dense:
        adv_d = jnp.asarray(advantages, jnp.float32)
        assert adv_d.shape == (rows_padded, _LANES), (adv_d.shape, rows_padded)
    else:
        adv_d = _to_lane_dense(advantages, rows_padded)

    dense = [
        _to_lane_dense(values, rows_padded),
        _to_lane_dense(action_log_probs, rows_padded),
        _to_lane_dense(old_action_log_probs, rows_padded),
        adv_d,
        _to_lane_dense(value_preds, rows_padded),
        _to_lane_dense(returns, rows_padded),
        _to_lane_dense(dist_entropy, rows_padded),
    ]

    block = pl.BlockSpec((tile_rows, _LANES), lambda i: (i, 0))
    part_spec = pl.BlockSpec((_SUBLANES, _LANES), lambda i: (i, 0))

    part = pl.pallas_call(
        _ppo_loss_kernel,
        out_shape=jax.ShapeDtypeStruct((n_tiles * _SUBLANES, _LANES), jnp.float32),
        grid=(n_tiles,),
        in_specs=[block] * 7,
        out_specs=part_spec,
        compiler_params=_compiler_params(7, tile_rows, 1),
    )(*dense)

    # Tiny scalar combine in JAX (keeps the tile axis "parallel" so both v7x
    # TensorCores can share the HBM stream); negligible vs. the streaming pass.
    part = part.reshape(n_tiles, _SUBLANES, _LANES)
    inv_n = 1.0 / n
    action_loss = -jnp.sum(part[:, 0, :]) * inv_n
    value_loss = 0.5 * jnp.sum(part[:, 1, :]) * inv_n
    dist_entropy_mean = jnp.sum(part[:, 2, :]) * inv_n
    total_loss = (value_loss * VALUE_LOSS_COEF + action_loss
                  - dist_entropy_mean * ENTROPY_COEF)
    return value_loss, action_loss, dist_entropy_mean, total_loss


if __name__ == "__main__":
    key = jax.random.PRNGKey(0)
    T, B = 8, 2  # small rollout: 8 steps, 2 envs
    ks = jax.random.split(key, 6)

    # rollout buffers, shaped like habitat's RolloutStorage: (T+1, B, 1)
    returns_buf = jax.random.normal(ks[0], (T + 1, B, 1), dtype=jnp.float32)
    value_preds_buf = jax.random.normal(ks[1], (T + 1, B, 1), dtype=jnp.float32)

    # normalized advantages, kept lane-dense between the two kernels
    adv_dense = get_advantages(returns_buf, value_preds_buf, return_dense=True)
    N = T * B
    advantages = adv_dense.reshape(-1)[:N].reshape(T, B, 1)  # module-shaped view

    # minibatch quantities (single minibatch = whole rollout here)
    old_action_log_probs = -jnp.abs(jax.random.normal(ks[2], (N, 1), dtype=jnp.float32))
    value_preds_mb = value_preds_buf[:-1].reshape(N, 1)
    returns_mb = returns_buf[:-1].reshape(N, 1)

    # TODO(synk): actor_critic.evaluate_actions is an external injected policy net;
    # its outputs (values, action_log_probs, dist_entropy) are synthesized here.
    values_new = value_preds_mb + 0.1 * jax.random.normal(ks[3], (N, 1), dtype=jnp.float32)
    action_log_probs_new = old_action_log_probs + 0.05 * jax.random.normal(
        ks[4], (N, 1), dtype=jnp.float32)
    dist_entropy = jnp.abs(jax.random.normal(ks[5], (N, 1), dtype=jnp.float32))

    value_loss, action_loss, entropy, total_loss = ppo_losses(
        values_new, action_log_probs_new, old_action_log_probs,
        adv_dense, value_preds_mb, returns_mb, dist_entropy,
        advantages_is_dense=True)

    jax.block_until_ready((advantages, adv_dense, value_loss, action_loss,
                           entropy, total_loss))
    print("KERNEL_OK")
</pallas_src>

<mosaic_0001>
module attributes {stable_mosaic.version = 11 : i64} {
  func.func @_adv_norm_fused_kernel(%arg0: memref<8x128xf32, #tpu.memory_space<vmem>>, %arg1: memref<8x128xf32, #tpu.memory_space<vmem>>, %arg2: memref<8x128xf32, #tpu.memory_space<vmem>>) attributes {dimension_semantics = [], scalar_prefetch = 0 : i64, scratch_operands = 0 : i64, tpu.core_type = #tpu.core_type<tc>} {
    %c0 = arith.constant 0 : index
    %c0_0 = arith.constant 0 : index
    %0 = vector.load %arg0[%c0, %c0_0] : memref<8x128xf32, #tpu.memory_space<vmem>>, vector<8x128xf32>
    %c0_1 = arith.constant 0 : index
    %c0_2 = arith.constant 0 : index
    %1 = vector.load %arg1[%c0_1, %c0_2] : memref<8x128xf32, #tpu.memory_space<vmem>>, vector<8x128xf32>
    %2 = arith.subf %0, %1 : vector<8x128xf32>
    %3 = vector.shape_cast %2 : vector<8x128xf32> to vector<1x8x128xf32>
    %cst = arith.constant dense<0.000000e+00> : vector<1xf32>
    %4 = vector.multi_reduction <add>, %3, %cst [1, 2] : vector<1x8x128xf32> to vector<1xf32>
    %5 = vector.shape_cast %4 : vector<1xf32> to vector<1x1x1xf32>
    %6 = vector.extract %5[0, 0, 0] : f32 from vector<1x1x1xf32>
    %7 = arith.mulf %2, %2 : vector<8x128xf32>
    %8 = vector.shape_cast %7 : vector<8x128xf32> to vector<1x8x128xf32>
    %cst_3 = arith.constant dense<0.000000e+00> : vector<1xf32>
    %9 = vector.multi_reduction <add>, %8, %cst_3 [1, 2] : vector<1x8x128xf32> to vector<1xf32>
    %10 = vector.shape_cast %9 : vector<1xf32> to vector<1x1x1xf32>
    %11 = vector.extract %10[0, 0, 0] : f32 from vector<1x1x1xf32>
    %cst_4 = arith.constant 6.250000e-02 : f32
    %12 = arith.mulf %6, %cst_4 : f32
    %13 = arith.mulf %6, %12 : f32
    %14 = arith.subf %11, %13 : f32
    %cst_5 = arith.constant 0.0666666701 : f32
    %15 = arith.mulf %14, %cst_5 : f32
    %cst_6 = arith.constant 0.000000e+00 : f32
    %16 = arith.maximumf %15, %cst_6 : f32
    %17 = math.sqrt %16 : f32
    %cst_7 = arith.constant 9.99999974E-6 : f32
    %18 = arith.addf %17, %cst_7 : f32
    %cst_8 = arith.constant 1.000000e+00 : f32
    %19 = arith.divf %cst_8, %18 : f32
    %20 = vector.broadcast %12 : f32 to vector<8x128xf32>
    %21 = arith.subf %2, %20 : vector<8x128xf32>
    %22 = vector.broadcast %19 : f32 to vector<8x128xf32>
    %23 = arith.mulf %21, %22 : vector<8x128xf32>
    %24 = tpu.iota {dimensions = array<i32: 0>} : vector<8x128xi32>
    %25 = tpu.iota {dimensions = array<i32: 1>} : vector<8x128xi32>
    %c0_i32 = arith.constant 0 : i32
    %26 = vector.broadcast %c0_i32 : i32 to vector<8x128xi32>
    %27 = arith.addi %26, %24 : vector<8x128xi32>
    %c128_i32 = arith.constant 128 : i32
    %28 = vector.broadcast %c128_i32 : i32 to vector<8x128xi32>
    %29 = arith.muli %27, %28 : vector<8x128xi32>
    %30 = arith.addi %29, %25 : vector<8x128xi32>
    %c16_i32 = arith.constant 16 : i32
    %31 = vector.broadcast %c16_i32 : i32 to vector<8x128xi32>
    %32 = arith.cmpi slt, %30, %31 : vector<8x128xi32>
    %cst_9 = arith.constant 0.000000e+00 : f32
    %33 = vector.broadcast %cst_9 : f32 to vector<8x128xf32>
    %34 = arith.select %32, %23, %33 : vector<8x128xi1>, vector<8x128xf32>
    %c0_10 = arith.constant 0 : index
    %c0_11 = arith.constant 0 : index
    %35 = vector.load %arg2[%c0_10, %c0_11] : memref<8x128xf32, #tpu.memory_space<vmem>>, vector<8x128xf32>
    tpu.vector_store %arg2[%c0_10, %c0_11], %34 {strides = array<i32>} : memref<8x128xf32, #tpu.memory_space<vmem>>, vector<8x128xf32>,
    return
  }
}

</mosaic_0001>

<llo_original>
// kernel: tpu_custom_call.1
$region0: #{tpu_custom_call.1}
  #allocation0 [shape = 'u32[]', space=smem, size = 0x4, offset = 0x4, fixed_abs, tag = 'smem constant byte address 0x4 - core index']
  #allocation1 [shape = 'u32[144,128]{1,0:T(1,128)}', space=vmem, size = 0x12000, scoped, tag = 'internal scratch']
  %s0 = inlined_call_operand.hbm [shape: f32[8,128], index: 0, kind: input, shape index: {}]
  %s1 = inlined_call_operand.hbm [shape: f32[8,128], index: 1, kind: input, shape index: {}]
  %s2 = inlined_call_operand.hbm [shape: f32[8,128], index: 2, kind: output, shape index: {}]
  %s3 = sld [smem:[#allocation0]]
  $region26: #{tpu_custom_call.1} parent=0
    _
  %s5 = ssub.s32 1, %s3
  %s6 = scalar_select 0, %s5, %s3
  $region1: #{tpu_custom_call.1} parent=0
    #allocation2 [shape = 'u8[4096]{0}', space=vmem, size = 0x1000, scoped, tag = 'input window, operand 0, single buffered']
    #allocation3 [shape = 's32[1]{0}', space=sflag, size = 0x4, scoped, tag = 'scoped memory for tpu_custom_call.1']
    #allocation4 [shape = 's32[1]{0}', space=sflag, size = 0x4, scoped, tag = 'scoped memory for tpu_custom_call.1']
    #allocation5 [shape = 'u8[4096]{0}', space=vmem, size = 0x1000, scoped, tag = 'input window, operand 1, single buffered']
    #allocation6 [shape = 's32[1]{0}', space=sflag, size = 0x4, scoped, tag = 'scoped memory for tpu_custom_call.1']
    #allocation7 [shape = 'u8[4096]{0}', space=vmem, size = 0x1000, scoped, tag = 'output window, operand 0, single buffered']
    %7 = vsyncpa [#allocation3], 0
    %8 = vsyncpa [#allocation6], 0
    %9 = vsyncpa [#allocation4], 0
    // Predicated region
    $region2: #{tpu_custom_call.1} parent=1 // pred_check
      _
    $region3: #{tpu_custom_call.1} parent=1 // pred_check_branch
      %11 = sbr.rel (0) target = $region5
    $region4: #{tpu_custom_call.1} parent=1 // pred_region
      %s13 = ssub.s32 128, 128
      %14 = vsyncadd [#allocation3], %s13
      %s16 = sshll.u32 [#allocation2], 4
      %s17 = int_to_ptr.vmem [resolvable:$true] %s16
      %19 = dma.hbm_to_vmem [thread:$0]  %s0, 128, %s17, [#allocation3]
    $region5: #{tpu_custom_call.1} parent=1 // pred_fallthru
      _
    // Predicated region
    $region6: #{tpu_custom_call.1} parent=1 // pred_check
      _
    $region7: #{tpu_custom_call.1} parent=1 // pred_check_branch
      %21 = sbr.rel (0) target = $region9
    $region8: #{tpu_custom_call.1} parent=1 // pred_region
      %s23 = ssub.s32 128, 128
      %24 = vsyncadd [#allocation6], %s23
      %s26 = sshll.u32 [#allocation5], 4
      %s27 = int_to_ptr.vmem [resolvable:$true] %s26
      %29 = dma.hbm_to_vmem [thread:$0]  %s1, 128, %s27, [#allocation6]
    $region9: #{tpu_custom_call.1} parent=1 // pred_fallthru
      _
    // Predicated region
    $region10: #{tpu_custom_call.1} parent=1 // pred_check
      _
    $region11: #{tpu_custom_call.1} parent=1 // pred_check_branch
      %31 = sbr.rel (0) target = $region13
    $region12: #{tpu_custom_call.1} parent=1 // pred_region
      %32 = dma.done [#allocation3], 128
    $region13: #{tpu_custom_call.1} parent=1 // pred_fallthru
      _
    // Predicated region
    $region14: #{tpu_custom_call.1} parent=1 // pred_check
      _
    $region15: #{tpu_custom_call.1} parent=1 // pred_check_branch
      %34 = sbr.rel (0) target = $region17
    $region16: #{tpu_custom_call.1} parent=1 // pred_region
      %35 = dma.done [#allocation6], 128
    $region17: #{tpu_custom_call.1} parent=1 // pred_fallthru
      _
    %v36 = vld [vmem:[#allocation2] sm:$0xff]
    %v37 = vld [vmem:[#allocation5] sm:$0xff]
    %v38 = vsub.f32 %v36, %v37
    %39 = vadd.xlane.f32.xlu0 %v38
    %v40 = vpop.xlane.xlu0 %39
    %v41 = vrot.slane %v40, 4
    %v42 = vadd.f32 %v40, %v41
    %v43 = vrot.slane %v42, 2
    %v44 = vadd.f32 %v42, %v43
    %v45 = vrot.slane %v44, 1
    %v46 = vadd.f32 %v44, %v45
    %s47 = vtos %v46
    %v48 = vmul.f32 %v38, %v38
    %49 = vadd.xlane.f32.xlu0 %v48
    %v50 = vpop.xlane.xlu0 %49
    %v51 = vrot.slane %v50, 4
    %v52 = vadd.f32 %v50, %v51
    %v53 = vrot.slane %v52, 2
    %v54 = vadd.f32 %v52, %v53
    %v55 = vrot.slane %v54, 1
    %v56 = vadd.f32 %v54, %v55
    %s57 = vtos %v56
    %s58 = smul.f32 %s47, 0.0625
    %s59 = smul.f32 %s47, %s58
    %s60 = ssub.f32 %s57, %s59
    %s61 = smul.f32 %s60, 0.06666667
    %s62 = smax.f32 %s61, 0.0
    %v63 = vstv %s62
    %v64 = vrsqrt.pop %v63
    %v65 = vmul.f32 %v63, %v64
    %vm66 = vcmp.eq.f32.partialorder %v63, inf
    %v67 = vsel %vm66, %v63, %v65
    %vm68 = vcmp.eq.f32.partialorder %v63, 0.0
    %v69 = vand.u32 %v63, 2147483648
    %v70 = vsel %vm68, %v69, %v67
    %s71 = vtos %v70
    %s72 = sadd.f32 %s71, 1e-05
    %v73 = vstv %s72
    %v74 = vrcp.pop %v73
    %s75 = vtos %v74
    %v76 = vstv %s58
    %v77 = vsub.f32 %v38, %v76
    %v78 = vstv %s75
    %v79 = vmul.f32 %v77, %v78
    %v80 = vlaneseq
    %v81 = vshrl.u32 %v80, 7
    %v82 = vlaneseq
    %v83 = vand.u32 %v82, 127
    %v84 = vmul.u32 %v81, 128
    %v85 = vadd.s32 %v84, %v83
    %vm86 = vcmp.lt.s32.totalorder %v85, 16
    %v87 = vsel %vm86, %v79, 0.0
    %88 = vst [vmem:[#allocation7] sm:$0xff] %v87
    // Predicated region
    $region18: #{tpu_custom_call.1} parent=1 // pred_check
      _
    $region19: #{tpu_custom_call.1} parent=1 // pred_check_branch
      %90 = sbr.rel (0) target = $region21
    $region20: #{tpu_custom_call.1} parent=1 // pred_region
      %s92 = ssub.s32 128, 128
      %93 = vsyncadd [#allocation4], %s92
      %s95 = sshll.u32 [#allocation7], 4
      %s96 = int_to_ptr.vmem [resolvable:$true] %s95
      %98 = dma.vmem_to_hbm [thread:$0]  %s96, 128, %s2, [#allocation4]
    $region21: #{tpu_custom_call.1} parent=1 // pred_fallthru
      _
    // Predicated region
    $region22: #{tpu_custom_call.1} parent=1 // pred_check
      _
    $region23: #{tpu_custom_call.1} parent=1 // pred_check_branch
      %100 = sbr.rel (0) target = $region25
    $region24: #{tpu_custom_call.1} parent=1 // pred_region
      %101 = dma.done [#allocation4], 128
    $region25: #{tpu_custom_call.1} parent=1 // pred_fallthru
      _
    %102 = vsyncpa [#allocation3], 1
    %103 = vsyncpa [#allocation6], 1
    %104 = vsyncpa [#allocation4], 1

</llo_original>
